<compile_context>
chip_gen: v6e
topology: v6e:2x2x1
jax: 0.10.0
libtpu: 0.0.40
codegen_flags: <defaults>
</compile_context>

<pallas_src>
import jax
import jax.numpy as jnp
from jax.experimental import pallas as pl
from jax.experimental.pallas import tpu as pltpu


def _round_up(a, b):
    return ((a + b - 1) // b) * b


def _cdiv(a, b):
    return (a + b - 1) // b


def _num_tensorcores():
    """2 on v7x (megacore-style sharding of the parallel grid axis), else 1."""
    try:
        kind = jax.devices()[0].device_kind.lower()
    except Exception:
        return 1
    return 2 if ("v7" in kind or "7x" in kind) else 1


def cond_mlp_kernel(cat_ref, w1_ref, b1_ref, w2_ref, b2_ref, w3_ref, b3_ref, o_ref):
    # Layer 0 (x2h fused + z-half stacked): [tb, in_dim] @ [in_dim, hidden]
    a1 = jnp.dot(cat_ref[...], w1_ref[...],
                 preferred_element_type=jnp.float32) + b1_ref[...]
    h1 = jnp.maximum(a1, 0.0).astype(w2_ref.dtype)           # ReLU, back to bf16

    # Layer 1: Linear(hidden -> hidden) + ReLU
    a2 = jnp.dot(h1, w2_ref[...],
                 preferred_element_type=jnp.float32) + b2_ref[...]
    h2 = jnp.maximum(a2, 0.0).astype(w3_ref.dtype)

    # Layer 2 (last): Linear(hidden -> output_dim), no activation (act_out=None)
    a3 = jnp.dot(h2, w3_ref[...],
                 preferred_element_type=jnp.float32) + b3_ref[...]
    o_ref[...] = a3.astype(o_ref.dtype)


def cond_mlp_generator(x, z, params, *, tb=4096, compute_dtype=jnp.bfloat16,
                       out_dtype=jnp.float32, num_tensorcores=None):
    """x: [N, x_dim] f32, z: [N, z_dim] f32. Returns [N, output_dim] in out_dtype."""
    (wx, bx, w1h, w1z, b1, w2, b2, w3, b3) = params
    n, x_dim = x.shape
    z_dim = z.shape[1]
    hidden = w2.shape[0]
    out_dim = w3.shape[1]
    in_dim = x_dim + z_dim

    # ---- fuse x2h into list_w[0] (no nonlinearity between them), in f32 ------
    #   cat @ W1 + b1 = x @ (Wx @ W1_h) + z @ W1_z + (bx @ W1_h + b1)
    wxh_f32 = wx.astype(jnp.float32) @ w1h.astype(jnp.float32)        # [x_dim, hidden]
    b1_f32 = bx.astype(jnp.float32) @ w1h.astype(jnp.float32) + b1    # [1, hidden]
    # Stack the fused x-half and the z-half into ONE layer-0 weight -> one matmul.
    w1_c = jnp.concatenate([wxh_f32, w1z.astype(jnp.float32)],
                           axis=0).astype(compute_dtype)              # [in_dim, hidden]

    # ---- bf16 weights / activations, biases stay f32 (added post-accum) ------
    w2_c = w2.astype(compute_dtype)
    w3_c = w3.astype(compute_dtype)
    b1_c = b1_f32.astype(jnp.float32)
    b2_c = b2.astype(jnp.float32)
    b3_c = b3.astype(jnp.float32)

    # ---- batch tiling: 16-aligned tiles, TC-aware grid, ragged N via padding -
    num_tc = _num_tensorcores() if num_tensorcores is None else num_tensorcores
    n_ceil = _round_up(max(n, 1), 16)
    if num_tc > 1:
        grid = num_tc * max(1, _cdiv(n_ceil, tb * num_tc))   # even split across TCs
    else:
        grid = max(1, _cdiv(n_ceil, tb))                     # never shrink on 1 TC
    tb_eff = _round_up(_cdiv(n_ceil, grid), 16)
    n_pad = grid * tb_eff

    # Single fused wrapper pass: concat + cast + pad (replaces 2 pad/cast passes).
    cat = jnp.concatenate([x, z], axis=-1).astype(compute_dtype)
    cat_p = jnp.pad(cat, ((0, n_pad - n), (0, 0)))

    batch_spec = pl.BlockSpec((tb_eff, in_dim), lambda i: (i, 0))
    full_spec = lambda arr: pl.BlockSpec(arr.shape, lambda i: (0,) * arr.ndim)
    # NOTE: at hidden>=2048 the weights should be single-buffered
    # (pipeline_mode=pl.Buffered(1)) or kept in persistent scratch; negligible here.

    w_bytes = 2 * (in_dim * hidden + hidden * hidden + hidden * out_dim)
    cost = pl.CostEstimate(
        flops=int(2 * n_pad * (in_dim * hidden + hidden * hidden + hidden * out_dim)),
        transcendentals=0,
        bytes_accessed=int(2 * n_pad * in_dim
                           + jnp.dtype(out_dtype).itemsize * n_pad * out_dim
                           + w_bytes + 4 * (2 * hidden + out_dim)),
    )

    out = pl.pallas_call(
        cond_mlp_kernel,
        out_shape=jax.ShapeDtypeStruct((n_pad, out_dim), out_dtype),
        grid_spec=pltpu.PrefetchScalarGridSpec(
            num_scalar_prefetch=0,
            grid=(grid,),
            in_specs=[
                batch_spec,               # concat([x@Wx@W1_h-form, z]) tile [tb, in_dim]
                full_spec(w1_c),          # stacked layer-0 weight [in_dim, hidden]
                full_spec(b1_c),          # fused bias             [1, hidden]
                full_spec(w2_c),          # W2                     [hidden, hidden]
                full_spec(b2_c),          # b2                     [1, hidden]
                full_spec(w3_c),          # W3                     [hidden, out_dim]
                full_spec(b3_c),          # b3                     [1, out_dim]
            ],
            out_specs=pl.BlockSpec((tb_eff, out_dim), lambda i: (i, 0)),
        ),
        compiler_params=pltpu.CompilerParams(
            dimension_semantics=("parallel",),
            vmem_limit_bytes=32 * 1024 * 1024),
        cost_estimate=cost,
    )(cat_p, w1_c, b1_c, w2_c, b2_c, w3_c, b3_c)

    return out[:n]


def _ref_forward(x, z, params):
    """Pure-JAX f32 reference mirroring the PyTorch module forward."""
    (wx, bx, w1h, w1z, b1, w2, b2, w3, b3) = params
    h1 = x @ wx + bx
    cat = jnp.concatenate([h1, z], axis=-1)
    w1 = jnp.concatenate([w1h, w1z], axis=0)
    h = jax.nn.relu(cat @ w1 + b1)
    h = jax.nn.relu(h @ w2 + b2)
    return h @ w3 + b3


if __name__ == "__main__":
    # Small shapes consistent with the module (gen_depth = 3 -> 3 linear layers).
    x_dim = 16
    z_dim = 16
    hidden_dim = 32
    output_dim = 16

    key = jax.random.PRNGKey(0)
    keys = jax.random.split(key, 12)

    def init_linear(kw, kb, fan_in, fan_out):
        bound = 1.0 / jnp.sqrt(fan_in)
        w = jax.random.uniform(kw, (fan_in, fan_out), jnp.float32, -bound, bound)
        b = jax.random.uniform(kb, (1, fan_out), jnp.float32, -bound, bound)
        return w, b

    wx, bx = init_linear(keys[0], keys[1], x_dim, z_dim)             # x2h
    w1, b1 = init_linear(keys[2], keys[3], 2 * z_dim, hidden_dim)    # list_w[0]
    w1h, w1z = w1[:z_dim], w1[z_dim:]
    w2, b2 = init_linear(keys[4], keys[5], hidden_dim, hidden_dim)   # list_w[1]
    w3, b3 = init_linear(keys[6], keys[7], hidden_dim, output_dim)   # list_w[2]
    params = (wx, bx, w1h, w1z, b1, w2, b2, w3, b3)

    # Case 1: tiny batch (exercises single/dual-TC minimal grid).
    batch = 8
    x = jax.random.normal(keys[8], (batch, x_dim), jnp.float32)
    z = jax.random.normal(keys[9], (batch, z_dim), jnp.float32)
    out = jax.block_until_ready(cond_mlp_generator(x, z, params))
    ref = _ref_forward(x, z, params)
    assert out.shape == (batch, output_dim)
    assert jnp.allclose(out, ref, atol=1e-1, rtol=1e-1), "mismatch vs JAX reference (case 1)"

    # Case 2: ragged batch (exercises 16-alignment padding).
    batch2 = 20
    x2 = jax.random.normal(keys[10], (batch2, x_dim), jnp.float32)
    z2 = jax.random.normal(keys[11], (batch2, z_dim), jnp.float32)
    out2 = jax.block_until_ready(cond_mlp_generator(x2, z2, params))
    ref2 = _ref_forward(x2, z2, params)
    assert out2.shape == (batch2, output_dim)
    assert jnp.allclose(out2, ref2, atol=1e-1, rtol=1e-1), "mismatch vs JAX reference (case 2)"

    # Case 3: multi-tile batch (exercises grid > 1 on every chip generation).
    batch3 = 8192 + 40
    k3 = jax.random.split(keys[11], 2)
    x3 = jax.random.normal(k3[0], (batch3, x_dim), jnp.float32)
    z3 = jax.random.normal(k3[1], (batch3, z_dim), jnp.float32)
    out3 = jax.block_until_ready(cond_mlp_generator(x3, z3, params))
    ref3 = _ref_forward(x3, z3, params)
    assert out3.shape == (batch3, output_dim)
    assert jnp.allclose(out3, ref3, atol=1e-1, rtol=1e-1), "mismatch vs JAX reference (case 3)"

    print("KERNEL_OK")
</pallas_src>

<mosaic_0001>
module attributes {stable_mosaic.version = 11 : i64} {
  func.func @cond_mlp_kernel(%arg0: i32, %arg1: memref<16x32xbf16, #tpu.memory_space<vmem>>, %arg2: memref<32x32xbf16, #tpu.memory_space<vmem>>, %arg3: memref<1x32xf32, #tpu.memory_space<vmem>>, %arg4: memref<32x32xbf16, #tpu.memory_space<vmem>>, %arg5: memref<1x32xf32, #tpu.memory_space<vmem>>, %arg6: memref<32x16xbf16, #tpu.memory_space<vmem>>, %arg7: memref<1x16xf32, #tpu.memory_space<vmem>>, %arg8: memref<16x16xf32, #tpu.memory_space<vmem>>) attributes {dimension_semantics = [#tpu.dimension_semantics<parallel>], iteration_bounds = array<i64: 1>, scalar_prefetch = 0 : i64, scratch_operands = 0 : i64, tpu.core_type = #tpu.core_type<tc>, window_params = [{transform_indices = @transform_0, window_bounds = array<i64: 16, 32>}, {pipeline_mode = #tpu.pipeline_mode<synchronous>, transform_indices = @transform_1, window_bounds = array<i64: 32, 32>}, {pipeline_mode = #tpu.pipeline_mode<synchronous>, transform_indices = @transform_2, window_bounds = array<i64: 1, 32>}, {pipeline_mode = #tpu.pipeline_mode<synchronous>, transform_indices = @transform_3, window_bounds = array<i64: 32, 32>}, {pipeline_mode = #tpu.pipeline_mode<synchronous>, transform_indices = @transform_4, window_bounds = array<i64: 1, 32>}, {pipeline_mode = #tpu.pipeline_mode<synchronous>, transform_indices = @transform_5, window_bounds = array<i64: 32, 16>}, {pipeline_mode = #tpu.pipeline_mode<synchronous>, transform_indices = @transform_6, window_bounds = array<i64: 1, 16>}, {transform_indices = @transform_7, window_bounds = array<i64: 16, 16>}]} {
    %c0 = arith.constant 0 : index
    %c0_0 = arith.constant 0 : index
    %0 = vector.load %arg1[%c0, %c0_0] : memref<16x32xbf16, #tpu.memory_space<vmem>>, vector<16x32xbf16>
    %c0_1 = arith.constant 0 : index
    %c0_2 = arith.constant 0 : index
    %1 = vector.load %arg2[%c0_1, %c0_2] : memref<32x32xbf16, #tpu.memory_space<vmem>>, vector<32x32xbf16>
    %cst = arith.constant dense<0.000000e+00> : vector<16x32xf32>
    %2 = tpu.matmul %0, %1, %cst {dimension_numbers = #tpu.dot_dimension_numbers<[1], [0], [0], [1], [0, 0, 1, 1], [], []>} : vector<16x32xbf16>, vector<32x32xbf16>, vector<16x32xf32> -> vector<16x32xf32>
    %c0_3 = arith.constant 0 : index
    %c0_4 = arith.constant 0 : index
    %3 = vector.load %arg3[%c0_3, %c0_4] : memref<1x32xf32, #tpu.memory_space<vmem>>, vector<1x32xf32>
    %4 = vector.broadcast %3 : vector<1x32xf32> to vector<16x32xf32>
    %5 = arith.addf %2, %4 : vector<16x32xf32>
    %cst_5 = arith.constant 0.000000e+00 : f32
    %6 = vector.broadcast %cst_5 : f32 to vector<16x32xf32>
    %7 = arith.maximumf %5, %6 : vector<16x32xf32>
    %8 = arith.truncf %7 : vector<16x32xf32> to vector<16x32xbf16>
    %c0_6 = arith.constant 0 : index
    %c0_7 = arith.constant 0 : index
    %9 = vector.load %arg4[%c0_6, %c0_7] : memref<32x32xbf16, #tpu.memory_space<vmem>>, vector<32x32xbf16>
    %cst_8 = arith.constant dense<0.000000e+00> : vector<16x32xf32>
    %10 = tpu.matmul %8, %9, %cst_8 {dimension_numbers = #tpu.dot_dimension_numbers<[1], [0], [0], [1], [0, 0, 1, 1], [], []>} : vector<16x32xbf16>, vector<32x32xbf16>, vector<16x32xf32> -> vector<16x32xf32>
    %c0_9 = arith.constant 0 : index
    %c0_10 = arith.constant 0 : index
    %11 = vector.load %arg5[%c0_9, %c0_10] : memref<1x32xf32, #tpu.memory_space<vmem>>, vector<1x32xf32>
    %12 = vector.broadcast %11 : vector<1x32xf32> to vector<16x32xf32>
    %13 = arith.addf %10, %12 : vector<16x32xf32>
    %cst_11 = arith.constant 0.000000e+00 : f32
    %14 = vector.broadcast %cst_11 : f32 to vector<16x32xf32>
    %15 = arith.maximumf %13, %14 : vector<16x32xf32>
    %16 = arith.truncf %15 : vector<16x32xf32> to vector<16x32xbf16>
    %c0_12 = arith.constant 0 : index
    %c0_13 = arith.constant 0 : index
    %17 = vector.load %arg6[%c0_12, %c0_13] : memref<32x16xbf16, #tpu.memory_space<vmem>>, vector<32x16xbf16>
    %cst_14 = arith.constant dense<0.000000e+00> : vector<16x16xf32>
    %18 = tpu.matmul %16, %17, %cst_14 {dimension_numbers = #tpu.dot_dimension_numbers<[1], [0], [0], [1], [0, 0, 1, 1], [], []>} : vector<16x32xbf16>, vector<32x16xbf16>, vector<16x16xf32> -> vector<16x16xf32>
    %c0_15 = arith.constant 0 : index
    %c0_16 = arith.constant 0 : index
    %19 = vector.load %arg7[%c0_15, %c0_16] : memref<1x16xf32, #tpu.memory_space<vmem>>, vector<1x16xf32>
    %20 = vector.broadcast %19 : vector<1x16xf32> to vector<16x16xf32>
    %21 = arith.addf %18, %20 : vector<16x16xf32>
    %c0_17 = arith.constant 0 : index
    %c0_18 = arith.constant 0 : index
    %22 = vector.load %arg8[%c0_17, %c0_18] : memref<16x16xf32, #tpu.memory_space<vmem>>, vector<16x16xf32>
    tpu.vector_store %arg8[%c0_17, %c0_18], %21 {strides = array<i32>} : memref<16x16xf32, #tpu.memory_space<vmem>>, vector<16x16xf32>,
    return
  }
  func.func @transform_0(%arg0: i32) -> (i32, i32) {
    %c0_i32 = arith.constant 0 : i32
    %c0_i32_0 = arith.constant 0 : i32
    return %arg0, %c0_i32 : i32, i32
  }
  func.func @transform_1(%arg0: i32) -> (i32, i32) {
    %c0_i32 = arith.constant 0 : i32
    %c0_i32_0 = arith.constant 0 : i32
    %c0_i32_1 = arith.constant 0 : i32
    return %c0_i32, %c0_i32_0 : i32, i32
  }
  func.func @transform_2(%arg0: i32) -> (i32, i32) {
    %c0_i32 = arith.constant 0 : i32
    %c0_i32_0 = arith.constant 0 : i32
    %c0_i32_1 = arith.constant 0 : i32
    return %c0_i32, %c0_i32_0 : i32, i32
  }
  func.func @transform_3(%arg0: i32) -> (i32, i32) {
    %c0_i32 = arith.constant 0 : i32
    %c0_i32_0 = arith.constant 0 : i32
    %c0_i32_1 = arith.constant 0 : i32
    return %c0_i32, %c0_i32_0 : i32, i32
  }
  func.func @transform_4(%arg0: i32) -> (i32, i32) {
    %c0_i32 = arith.constant 0 : i32
    %c0_i32_0 = arith.constant 0 : i32
    %c0_i32_1 = arith.constant 0 : i32
    return %c0_i32, %c0_i32_0 : i32, i32
  }
  func.func @transform_5(%arg0: i32) -> (i32, i32) {
    %c0_i32 = arith.constant 0 : i32
    %c0_i32_0 = arith.constant 0 : i32
    %c0_i32_1 = arith.constant 0 : i32
    return %c0_i32, %c0_i32_0 : i32, i32
  }
  func.func @transform_6(%arg0: i32) -> (i32, i32) {
    %c0_i32 = arith.constant 0 : i32
    %c0_i32_0 = arith.constant 0 : i32
    %c0_i32_1 = arith.constant 0 : i32
    return %c0_i32, %c0_i32_0 : i32, i32
  }
  func.func @transform_7(%arg0: i32) -> (i32, i32) {
    %c0_i32 = arith.constant 0 : i32
    %c0_i32_0 = arith.constant 0 : i32
    return %arg0, %c0_i32 : i32, i32
  }
}

</mosaic_0001>

<llo_original>
// kernel: tpu_custom_call.1
$region0: #{tpu_custom_call.1}
  #allocation0 [shape = 'u32[]', space=smem, size = 0x4, offset = 0x4, fixed_abs, tag = 'smem constant byte address 0x4 - core index']
  #allocation1 [shape = 'u32[144,128]{1,0:T(1,128)}', space=vmem, size = 0x12000, scoped, tag = 'internal scratch']
  %s0 = inlined_call_operand.vmem [shape: bf16[16,32], index: 0, kind: input, shape index: {}]
  %s1 = inlined_call_operand.vmem [shape: bf16[32,32], index: 1, kind: input, shape index: {}]
  %s2 = inlined_call_operand.vmem [shape: f32[1,32], index: 2, kind: input, shape index: {}]
  %s3 = inlined_call_operand.hbm [shape: bf16[32,32], index: 3, kind: input, shape index: {}]
  %s4 = inlined_call_operand.hbm [shape: f32[1,32], index: 4, kind: input, shape index: {}]
  %s5 = inlined_call_operand.vmem [shape: bf16[32,16], index: 5, kind: input, shape index: {}]
  %s6 = inlined_call_operand.vmem [shape: f32[1,16], index: 6, kind: input, shape index: {}]
  %s7 = inlined_call_operand.hbm [shape: f32[16,16], index: 7, kind: output, shape index: {}]
  %s8 = sld [smem:[#allocation0]]
  $region46: #{tpu_custom_call.1} parent=0
    _
  %s10 = ssub.s32 1, %s8
  %s11 = scalar_select 0, %s10, %s8
  $region1: #{tpu_custom_call.1} parent=0
    #allocation2 [shape = 'u8[8192]{0}', space=vmem, size = 0x2000, scoped, tag = 'input window, operand 3, single buffered']
    #allocation3 [shape = 's32[1]{0}', space=sflag, size = 0x4, scoped, tag = 'scoped memory for tpu_custom_call.1']
    #allocation4 [shape = 's32[1]{0}', space=sflag, size = 0x4, scoped, tag = 'scoped memory for tpu_custom_call.1']
    #allocation5 [shape = 'u8[512]{0}', space=vmem, size = 0x400, scoped, tag = 'input window, operand 4, single buffered']
    #allocation6 [shape = 's32[1]{0}', space=sflag, size = 0x4, scoped, tag = 'scoped memory for tpu_custom_call.1']
    #allocation7 [shape = 'u8[8192]{0}', space=vmem, size = 0x2000, scoped, tag = 'output window, operand 0, single buffered']
    %12 = vsyncpa [#allocation3], 0
    %13 = vsyncpa [#allocation6], 0
    %14 = vsyncpa [#allocation4], 0
    // Predicated region
    $region2: #{tpu_custom_call.1} parent=1 // pred_check
      _
    $region3: #{tpu_custom_call.1} parent=1 // pred_check_branch
      %16 = sbr.rel (0) target = $region5
    $region4: #{tpu_custom_call.1} parent=1 // pred_region
      _
    $region5: #{tpu_custom_call.1} parent=1 // pred_fallthru
      _
    // Predicated region
    $region6: #{tpu_custom_call.1} parent=1 // pred_check
      _
    $region7: #{tpu_custom_call.1} parent=1 // pred_check_branch
      %18 = sbr.rel (0) target = $region9
    $region8: #{tpu_custom_call.1} parent=1 // pred_region
      _
    $region9: #{tpu_custom_call.1} parent=1 // pred_fallthru
      _
    // Predicated region
    $region10: #{tpu_custom_call.1} parent=1 // pred_check
      _
    $region11: #{tpu_custom_call.1} parent=1 // pred_check_branch
      %20 = sbr.rel (0) target = $region13
    $region12: #{tpu_custom_call.1} parent=1 // pred_region
      _
    $region13: #{tpu_custom_call.1} parent=1 // pred_fallthru
      _
    // Predicated region
    $region14: #{tpu_custom_call.1} parent=1 // pred_check
      _
    $region15: #{tpu_custom_call.1} parent=1 // pred_check_branch
      %22 = sbr.rel (0) target = $region17
    $region16: #{tpu_custom_call.1} parent=1 // pred_region
      %s24 = ssub.s32 256, 256
      %25 = vsyncadd [#allocation3], %s24
      %s26 = sshll.u32 [#allocation2], 4
      %s27 = int_to_ptr.vmem [resolvable:$true] %s26
      %32 = dma.hbm_to_vmem [thread:$0]  %s3, 256, %s27, [#allocation3], 64, 64, 4
    $region17: #{tpu_custom_call.1} parent=1 // pred_fallthru
      _
    // Predicated region
    $region18: #{tpu_custom_call.1} parent=1 // pred_check
      _
    $region19: #{tpu_custom_call.1} parent=1 // pred_check_branch
      %34 = sbr.rel (0) target = $region21
    $region20: #{tpu_custom_call.1} parent=1 // pred_region
      %s36 = ssub.s32 16, 16
      %37 = vsyncadd [#allocation6], %s36
      %s39 = sshll.u32 [#allocation5], 4
      %s40 = int_to_ptr.vmem [resolvable:$true] %s39
      %42 = dma.hbm_to_vmem [thread:$0]  %s4, 16, %s40, [#allocation6]
    $region21: #{tpu_custom_call.1} parent=1 // pred_fallthru
      _
    // Predicated region
    $region22: #{tpu_custom_call.1} parent=1 // pred_check
      _
    $region23: #{tpu_custom_call.1} parent=1 // pred_check_branch
      %44 = sbr.rel (0) target = $region25
    $region24: #{tpu_custom_call.1} parent=1 // pred_region
      _
    $region25: #{tpu_custom_call.1} parent=1 // pred_fallthru
      _
    // Predicated region
    $region26: #{tpu_custom_call.1} parent=1 // pred_check
      _
    $region27: #{tpu_custom_call.1} parent=1 // pred_check_branch
      %46 = sbr.rel (0) target = $region29
    $region28: #{tpu_custom_call.1} parent=1 // pred_region
      _
    $region29: #{tpu_custom_call.1} parent=1 // pred_fallthru
      _
    // Predicated region
    $region30: #{tpu_custom_call.1} parent=1 // pred_check
      _
    $region31: #{tpu_custom_call.1} parent=1 // pred_check_branch
      %48 = sbr.rel (0) target = $region33
    $region32: #{tpu_custom_call.1} parent=1 // pred_region
      %49 = dma.done [#allocation3], 256
    $region33: #{tpu_custom_call.1} parent=1 // pred_fallthru
      _
    // Predicated region
    $region34: #{tpu_custom_call.1} parent=1 // pred_check
      _
    $region35: #{tpu_custom_call.1} parent=1 // pred_check_branch
      %51 = sbr.rel (0) target = $region37
    $region36: #{tpu_custom_call.1} parent=1 // pred_region
      %52 = dma.done [#allocation6], 16
    $region37: #{tpu_custom_call.1} parent=1 // pred_fallthru
      _
    %v54 = vld [vmem:[%s0] sm:$0xf]
    %v55 = vld [vmem:[%s0 + $0x4] sm:$0xf]
    %v56 = vld [vmem:[%s1] sm:$0xf]
    %v57 = vld [vmem:[%s1 + $0x4] sm:$0xf]
    %v58 = vld [vmem:[%s1 + $0x8] sm:$0xf]
    %v59 = vld [vmem:[%s1 + $0xc] sm:$0xf]
    %v60 = vld [vmem:[%s2] sm:$0x1]
    %v62 = vlaneseq
    %v63 = vshrl.u32 %v62, 7
    %v64 = vsub.s32 0, %v63
    %v65 = vrot.slane %v60, %v64
    %v69 = vunpack.c.l.b16 %v54
    %v70 = vunpack.c.l.b16 %v55
    %v71 = vpack.c.b16 %v70, %v69
    %v76 = vunpack.c.l.b16 %v56
    %v77 = vunpack.c.l.b16 %v57
    %v78 = vunpack.c.l.b16 %v58
    %v79 = vunpack.c.l.b16 %v59
    %v80 = vpack.c.b16 %v77, %v76
    %v81 = vpack.c.b16 %v79, %v78
    %vm84 = vcmask 261120
    %v86 = vsel %vm84, %v71, 0
    %88 = vmatprep.subr.bf16.mxu0 0
    %89 = vmatpush1.bf16.msra.mxu0 0
    %90 = vmatprep.subr.bf16.mxu0 0
    %91 = vmatpush1.bf16.msra.mxu0 0
    %92 = vmatprep.subr.bf16.mxu0 0
    %93 = vmatpush1.bf16.msra.mxu0 0
    %94 = vmatprep.subr.bf16.mxu0 0
    %95 = vmatpush1.bf16.msra.mxu0 0
    %96 = vmatprep.subr.bf16.mxu0 0
    %97 = vmatpush1.bf16.msra.mxu0 0
    %98 = vmatprep.subr.bf16.mxu0 0
    %99 = vmatpush1.bf16.msra.mxu0 0
    %100 = vmatprep.subr.bf16.mxu0 0
    %101 = vmatpush1.bf16.msra.mxu0 %v81
    %102 = vmatprep.subr.bf16.mxu0 0
    %103 = vmatpush1.bf16.msra.mxu0 %v80
    %104 = vmatprep.subr.bf16.mxu0 0
    %105 = vmatpush2.bf16.msra.mxu0 0
    %106 = vmatprep.subr.bf16.mxu0 0
    %107 = vmatpush2.bf16.msra.mxu0 0
    %108 = vmatprep.subr.bf16.mxu0 0
    %109 = vmatpush2.bf16.msra.mxu0 0
    %110 = vmatprep.subr.bf16.mxu0 0
    %111 = vmatpush2.bf16.msra.mxu0 0
    %112 = vmatprep.subr.bf16.mxu0 0
    %113 = vmatpush2.bf16.msra.mxu0 0
    %114 = vmatprep.subr.bf16.mxu0 0
    %115 = vmatpush2.bf16.msra.mxu0 0
    %116 = vmatprep.subr.bf16.mxu0 0
    %117 = vmatpush2.bf16.msra.mxu0 0
    %118 = vmatprep.subr.bf16.mxu0 0
    %119 = vmatpush2.bf16.msra.mxu0 0
    %120 = vmatprep.mubr.bf16.mxu0 0
    %121 = vmatmul.mubr.bf16.gmra.mxu0 %v86
    %v122 = vpop.f32.mrf.mxu0
    %v123 = vadd.f32 %v65, %v122
    %v124 = vpop.f32.mrf.mxu0
    %v125 = vpop.f32.mrf.mxu0
    %v126 = vadd.f32 %v65, %v125
    %v127 = vpop.f32.mrf.mxu0
    %128 = vdwg.mxu0
    %v129 = vmax.f32 %v123, 0.0
    %v130 = vmax.f32 %v126, 0.0
    %v131 = vpack.c.bf16 %v130, %v129
    %v132 = vld [vmem:[#allocation2] sm:$0xf]
    %v133 = vld [vmem:[#allocation2 + $0x4] sm:$0xf]
    %v134 = vld [vmem:[#allocation2 + $0x8] sm:$0xf]
    %v135 = vld [vmem:[#allocation2 + $0xc] sm:$0xf]
    %v136 = vld [vmem:[#allocation5] sm:$0x1]
    %v138 = vlaneseq
    %v139 = vshrl.u32 %v138, 7
    %v140 = vsub.s32 0, %v139
    %v141 = vrot.slane %v136, %v140
    %v147 = vunpack.c.l.b16 %v132
    %v148 = vunpack.c.l.b16 %v133
    %v149 = vunpack.c.l.b16 %v134
    %v150 = vunpack.c.l.b16 %v135
    %v151 = vpack.c.b16 %v148, %v147
    %v152 = vpack.c.b16 %v150, %v149
    %v156 = vsel %vm84, %v131, 0
    %158 = vmatprep.subr.bf16.mxu0 0
    %159 = vmatpush1.bf16.msra.mxu0 0
    %160 = vmatprep.subr.bf16.mxu0 0
    %161 = vmatpush1.bf16.msra.mxu0 0
    %162 = vmatprep.subr.bf16.mxu0 0
    %163 = vmatpush1.bf16.msra.mxu0 0
    %164 = vmatprep.subr.bf16.mxu0 0
    %165 = vmatpush1.bf16.msra.mxu0 0
    %166 = vmatprep.subr.bf16.mxu0 0
    %167 = vmatpush1.bf16.msra.mxu0 0
    %168 = vmatprep.subr.bf16.mxu0 0
    %169 = vmatpush1.bf16.msra.mxu0 0
    %170 = vmatprep.subr.bf16.mxu0 0
    %171 = vmatpush1.bf16.msra.mxu0 %v152
    %172 = vmatprep.subr.bf16.mxu0 0
    %173 = vmatpush1.bf16.msra.mxu0 %v151
    %174 = vmatprep.subr.bf16.mxu0 0
    %175 = vmatpush2.bf16.msra.mxu0 0
    %176 = vmatprep.subr.bf16.mxu0 0
    %177 = vmatpush2.bf16.msra.mxu0 0
    %178 = vmatprep.subr.bf16.mxu0 0
    %179 = vmatpush2.bf16.msra.mxu0 0
    %180 = vmatprep.subr.bf16.mxu0 0
    %181 = vmatpush2.bf16.msra.mxu0 0
    %182 = vmatprep.subr.bf16.mxu0 0
    %183 = vmatpush2.bf16.msra.mxu0 0
    %184 = vmatprep.subr.bf16.mxu0 0
    %185 = vmatpush2.bf16.msra.mxu0 0
    %186 = vmatprep.subr.bf16.mxu0 0
    %187 = vmatpush2.bf16.msra.mxu0 0
    %188 = vmatprep.subr.bf16.mxu0 0
    %189 = vmatpush2.bf16.msra.mxu0 0
    %190 = vmatprep.mubr.bf16.mxu0 0
    %191 = vmatmul.mubr.bf16.gmra.mxu0 %v156
    %v192 = vpop.f32.mrf.mxu0
    %v193 = vadd.f32 %v141, %v192
    %v194 = vpop.f32.mrf.mxu0
    %v195 = vpop.f32.mrf.mxu0
    %v196 = vadd.f32 %v141, %v195
    %v197 = vpop.f32.mrf.mxu0
    %198 = vdwg.mxu0
    %v199 = vmax.f32 %v193, 0.0
    %v200 = vmax.f32 %v196, 0.0
    %v201 = vpack.c.bf16 %v200, %v199
    %v202 = vld [vmem:[%s5] sm:$0xf]
    %v203 = vld [vmem:[%s5 + $0x4] sm:$0xf]
    %v204 = vld [vmem:[%s5 + $0x8] sm:$0xf]
    %v205 = vld [vmem:[%s5 + $0xc] sm:$0xf]
    %v206 = vld [vmem:[%s6] sm:$0x1]
    %v208 = vlaneseq
    %v209 = vshrl.u32 %v208, 7
    %v210 = vsub.s32 0, %v209
    %v211 = vrot.slane %v206, %v210
    %v217 = vunpack.c.l.b16 %v202
    %v218 = vunpack.c.l.b16 %v203
    %v219 = vunpack.c.l.b16 %v204
    %v220 = vunpack.c.l.b16 %v205
    %v221 = vpack.c.b16 %v218, %v217
    %v222 = vpack.c.b16 %v220, %v219
    %v226 = vsel %vm84, %v201, 0
    %228 = vmatprep.subr.bf16.mxu0 0
    %229 = vmatpush1.bf16.msra.mxu0 0
    %230 = vmatprep.subr.bf16.mxu0 0
    %231 = vmatpush1.bf16.msra.mxu0 0
    %232 = vmatprep.subr.bf16.mxu0 0
    %233 = vmatpush1.bf16.msra.mxu0 0
    %234 = vmatprep.subr.bf16.mxu0 0
    %235 = vmatpush1.bf16.msra.mxu0 0
    %236 = vmatprep.subr.bf16.mxu0 0
    %237 = vmatpush1.bf16.msra.mxu0 0
    %238 = vmatprep.subr.bf16.mxu0 0
    %239 = vmatpush1.bf16.msra.mxu0 0
    %240 = vmatprep.subr.bf16.mxu0 0
    %241 = vmatpush1.bf16.msra.mxu0 %v222
    %242 = vmatprep.subr.bf16.mxu0 0
    %243 = vmatpush1.bf16.msra.mxu0 %v221
    %244 = vmatprep.subr.bf16.mxu0 0
    %245 = vmatpush2.bf16.msra.mxu0 0
    %246 = vmatprep.subr.bf16.mxu0 0
    %247 = vmatpush2.bf16.msra.mxu0 0
    %248 = vmatprep.subr.bf16.mxu0 0
    %249 = vmatpush2.bf16.msra.mxu0 0
    %250 = vmatprep.subr.bf16.mxu0 0
    %251 = vmatpush2.bf16.msra.mxu0 0
    %252 = vmatprep.subr.bf16.mxu0 0
    %253 = vmatpush2.bf16.msra.mxu0 0
    %254 = vmatprep.subr.bf16.mxu0 0
    %255 = vmatpush2.bf16.msra.mxu0 0
    %256 = vmatprep.subr.bf16.mxu0 0
    %257 = vmatpush2.bf16.msra.mxu0 0
    %258 = vmatprep.subr.bf16.mxu0 0
    %259 = vmatpush2.bf16.msra.mxu0 0
    %260 = vmatprep.mubr.bf16.mxu0 0
    %261 = vmatmul.mubr.bf16.gmra.mxu0 %v226
    %v262 = vpop.f32.mrf.mxu0
    %v263 = vadd.f32 %v211, %v262
    %v264 = vpop.f32.mrf.mxu0
    %v265 = vpop.f32.mrf.mxu0
    %v266 = vadd.f32 %v211, %v265
    %v267 = vpop.f32.mrf.mxu0
    %268 = vdwg.mxu0
    %vm269 = vcmask 130048
    %270 = vst.msk [vmem:[#allocation7] sm:$0xff] %vm269, %v263
    %271 = vst.msk [vmem:[#allocation7 + $0x8] sm:$0xff] %vm269, %v266
    // Predicated region
    $region38: #{tpu_custom_call.1} parent=1 // pred_check
      _
    $region39: #{tpu_custom_call.1} parent=1 // pred_check_branch
      %273 = sbr.rel (0) target = $region41
    $region40: #{tpu_custom_call.1} parent=1 // pred_region
      %s275 = ssub.s32 256, 256
      %276 = vsyncadd [#allocation4], %s275
      %s277 = sshll.u32 [#allocation7], 4
      %s278 = int_to_ptr.vmem [resolvable:$true] %s277
      %283 = dma.vmem_to_hbm [thread:$0]  %s278, 256, %s7, [#allocation4], 128, 128, 8
    $region41: #{tpu_custom_call.1} parent=1 // pred_fallthru
      _
    // Predicated region
    $region42: #{tpu_custom_call.1} parent=1 // pred_check
      _
    $region43: #{tpu_custom_call.1} parent=1 // pred_check_branch
      %285 = sbr.rel (0) target = $region45
    $region44: #{tpu_custom_call.1} parent=1 // pred_region
      %286 = dma.done [#allocation4], 256
    $region45: #{tpu_custom_call.1} parent=1 // pred_fallthru
      _
    %287 = vsyncpa [#allocation3], 1
    %288 = vsyncpa [#allocation6], 1
    %289 = vsyncpa [#allocation4], 1

</llo_original>
